<compile_context>
chip_gen: v5e
topology: v5e:2x2
jax: 0.10.0
libtpu: 0.0.40
codegen_flags: <defaults>
</compile_context>

<pallas_src>
import jax
import jax.numpy as jnp
from jax import lax
from jax.experimental import pallas as pl
from jax.experimental.pallas import tpu as pltpu


def _round_up(v, m):
    return (v + m - 1) // m * m


def _vmem_caps():
    """(path-selection budget, hard clamp for vmem_limit_bytes) per chip gen."""
    try:
        cap = int(pltpu.get_tpu_info().vmem_capacity_bytes)
    except Exception:
        cap = 64 * 2**20                       # conservative (v7x-sized)
    if cap >= 96 * 2**20:                      # v5e / v6e: 128 MiB physical
        return 96 * 2**20, 110 * 2**20
    return 36 * 2**20, 48 * 2**20              # v7x: 64 MiB physical per TC


def _vmem_limit(nbytes, clamp):
    return int(min(max(nbytes + 8 * 2**20, 24 * 2**20), clamp))


# ----------------- single-pass kernel (whole (c, hw) slab resident) ---------

def _cam_single_kernel(beta_ref, x_ref, o_ref):
    # x_ref block: (bblk, c, hw_pad), kept in the input dtype for the MXU.
    x = x_ref[...]

    # Channel Gram matrix: contract the flattened-spatial (lane) axis of both
    # operands directly -> no transposed (hw, c) copy is materialized.
    gram = lax.dot_general(
        x, x,
        dimension_numbers=(((2,), (2,)), ((0,), (0,))),
        preferred_element_type=jnp.float32)                    # (bblk, c, c) f32

    # Row-wise softmax (numerically stable; matches torch.softmax), with beta
    # folded into the (c, c) matrix: c^2 multiplies instead of c*hw.
    gram = gram - jnp.max(gram, axis=-1, keepdims=True)
    p = jnp.exp(gram)
    attn = (beta_ref[0] * p) * pl.reciprocal(
        jnp.sum(p, axis=-1, keepdims=True), approx=False)

    y = lax.dot_general(
        attn.astype(x.dtype), x,
        dimension_numbers=(((2,), (1,)), ((0,), (0,))),
        preferred_element_type=jnp.float32)                    # (bblk, c, hw_pad)

    o_ref[...] = (y + x.astype(jnp.float32)).astype(o_ref.dtype)


def _cam_single_pass(x_flat, beta, bblk, per_batch_bytes, clamp):
    b_pad, c, hw_pad = x_flat.shape
    return pl.pallas_call(
        _cam_single_kernel,
        out_shape=jax.ShapeDtypeStruct((b_pad, c, hw_pad), x_flat.dtype),
        grid_spec=pltpu.PrefetchScalarGridSpec(
            num_scalar_prefetch=0,
            grid=(b_pad // bblk,),
            in_specs=[
                pl.BlockSpec(memory_space=pltpu.MemorySpace.SMEM),     # beta
                pl.BlockSpec((bblk, c, hw_pad), lambda i: (i, 0, 0)),
            ],
            out_specs=pl.BlockSpec((bblk, c, hw_pad), lambda i: (i, 0, 0)),
        ),
        compiler_params=pltpu.CompilerParams(
            dimension_semantics=("parallel",),
            vmem_limit_bytes=_vmem_limit(bblk * per_batch_bytes, clamp),
        ),
    )(beta, x_flat)


# ----------------- hw-tiled two-phase fallback (large c*hw) -----------------

def _cam_gram_kernel(beta_ref, x_ref, attn_ref):
    # Accumulate the (c, c) Gram directly into the resident output block
    # (its block index is constant across ki), so no extra VMEM scratch.
    k = pl.program_id(1)

    @pl.when(k == 0)
    def _():
        attn_ref[...] = jnp.zeros_like(attn_ref)

    xk = x_ref[0]                                              # (c, hw_tile)
    attn_ref[0] += lax.dot_general(
        xk, xk,
        dimension_numbers=(((1,), (1,)), ((), ())),
        preferred_element_type=jnp.float32)

    @pl.when(k == pl.num_programs(1) - 1)
    def _():
        g = attn_ref[0]
        g = g - jnp.max(g, axis=-1, keepdims=True)
        p = jnp.exp(g)
        # Fold beta once here instead of on every hw tile in phase 2.
        attn_ref[0] = (beta_ref[0] * p) * pl.reciprocal(
            jnp.sum(p, axis=-1, keepdims=True), approx=False)


def _cam_apply_kernel(attn_ref, x_ref, o_ref):
    xk = x_ref[0]                                              # (c, hw_tile)
    a = attn_ref[0].astype(xk.dtype)                           # beta already in
    y = lax.dot_general(
        a, xk,
        dimension_numbers=(((1,), (0,)), ((), ())),
        preferred_element_type=jnp.float32)
    o_ref[0] = (y + xk.astype(jnp.float32)).astype(o_ref.dtype)


def _cam_tiled(x_flat, beta, hw_tile, clamp):
    b, c, hw_pad = x_flat.shape
    n_hw = hw_pad // hw_tile
    c_sub = _round_up(c, 8)
    c_lane = _round_up(c, 128)
    dt = jnp.dtype(x_flat.dtype).itemsize

    # Phase 1: accumulate the (c, c) Gram (with beta folded) over hw tiles.
    p1_bytes = (2 * c_sub * hw_tile * dt        # double-buffered x tile
                + 2 * c_sub * c_lane * 4        # resident attn output block
                + 2 * c_sub * c_lane * 4)       # softmax f32 temporaries
    attn = pl.pallas_call(
        _cam_gram_kernel,
        out_shape=jax.ShapeDtypeStruct((b, c, c), jnp.float32),
        grid_spec=pltpu.PrefetchScalarGridSpec(
            num_scalar_prefetch=0,
            grid=(b, n_hw),
            in_specs=[
                pl.BlockSpec(memory_space=pltpu.MemorySpace.SMEM),     # beta
                pl.BlockSpec((1, c, hw_tile), lambda bi, ki: (bi, 0, ki)),
            ],
            out_specs=pl.BlockSpec((1, c, c), lambda bi, ki: (bi, 0, 0)),
        ),
        compiler_params=pltpu.CompilerParams(
            dimension_semantics=("parallel", "arbitrary"),
            vmem_limit_bytes=_vmem_limit(p1_bytes, clamp),
        ),
    )(beta, x_flat)

    # Phase 2: y = attn @ x per hw tile, fused with the residual add.  The
    # attn block only changes with bi, so a single buffer suffices.
    p2_bytes = (1 * c_sub * c_lane * 4          # attn tile (Buffered(1))
                + 1 * c_sub * c_lane * dt       # attn cast to input dtype
                + 2 * c_sub * hw_tile * dt      # x tile (double-buffered)
                + 2 * c_sub * hw_tile * dt      # out tile (double-buffered)
                + 2 * c_sub * hw_tile * 4)      # f32 temporaries
    out = pl.pallas_call(
        _cam_apply_kernel,
        out_shape=jax.ShapeDtypeStruct((b, c, hw_pad), x_flat.dtype),
        grid_spec=pltpu.PrefetchScalarGridSpec(
            num_scalar_prefetch=0,
            grid=(b, n_hw),
            in_specs=[
                pl.BlockSpec((1, c, c), lambda bi, ki: (bi, 0, 0),
                             pipeline_mode=pl.Buffered(1)),
                pl.BlockSpec((1, c, hw_tile), lambda bi, ki: (bi, 0, ki)),
            ],
            out_specs=pl.BlockSpec((1, c, hw_tile), lambda bi, ki: (bi, 0, ki)),
        ),
        compiler_params=pltpu.CompilerParams(
            dimension_semantics=("parallel", "parallel"),
            vmem_limit_bytes=_vmem_limit(p2_bytes, clamp),
        ),
    )(attn, x_flat)
    return out


# ----------------------------- public wrapper -------------------------------

def cam_forward(x, beta, *, hw_tile=1024, force_tiled=False):
    """x: (b, c, h, w), beta: (1,) float32 -> (b, c, h, w)."""
    b, c, h, w = x.shape
    hw = h * w
    dt = jnp.dtype(x.dtype).itemsize
    c_sub = _round_up(c, 8)
    c_lane = _round_up(c, 128)
    beta = jnp.asarray(beta, dtype=jnp.float32).reshape((1,))

    budget, clamp = _vmem_caps()

    # Per-image VMEM footprint of the single-pass path (input-dtype slabs,
    # f32 only for the Gram / softmax / y temporaries).
    hw_pad = _round_up(hw, 128)
    per_batch = (2 * c_sub * hw_pad * dt        # double-buffered input slab
                 + 2 * c_sub * hw_pad * dt      # double-buffered output slab
                 + 2 * c_sub * hw_pad * 4       # y / residual f32 temporaries
                 + 4 * c_sub * c_lane * 4)      # Gram / softmax temporaries

    if (not force_tiled) and per_batch <= budget:
        # Batch several images per grid step so tiny channel counts don't
        # leave per-step overhead / small DMAs as the bottleneck.
        bblk = int(max(1, min(b, 64, budget // per_batch)))
        if b >= 2:
            # Keep >= 2 parallel grid steps so v7x's two TensorCores both work.
            bblk = min(bblk, (b + 1) // 2)
        b_pad = _round_up(b, bblk)
        x_flat = x.reshape(b, c, hw)
        pad_b, pad_hw = b_pad - b, hw_pad - hw
        if pad_b or pad_hw:
            x_flat = jnp.pad(x_flat, ((0, pad_b), (0, 0), (0, pad_hw)))
        out = _cam_single_pass(x_flat, beta, bblk, per_batch, clamp)
    else:
        tile = min(_round_up(hw_tile, 128), _round_up(hw, 128))
        hw_pad_t = _round_up(hw, tile)
        x_flat = x.reshape(b, c, hw)
        if hw_pad_t != hw:
            x_flat = jnp.pad(x_flat, ((0, 0), (0, 0), (0, hw_pad_t - hw)))
        out = _cam_tiled(x_flat, beta, tile, clamp)

    return out[:b, :, :hw].reshape(b, c, h, w)


def cam_reference(x, beta):
    b, c, h, w = x.shape
    xf = x.reshape(b, c, h * w).astype(jnp.float32)
    attn = jnp.einsum("bcd,bed->bce", xf, xf)
    attn = jax.nn.softmax(attn, axis=-1)
    y = jnp.einsum("bce,bed->bcd", attn, xf).reshape(b, c, h, w)
    return beta[0] * y + x


if __name__ == "__main__":
    key = jax.random.PRNGKey(0)

    b, c, h, w = 2, 4, 16, 16
    x = jax.random.normal(key, (b, c, h, w), dtype=jnp.float32)

    # nn.Parameter(torch.zeros(1)) -> deterministic zero init
    beta = jnp.zeros((1,), dtype=jnp.float32)
    out = jax.block_until_ready(cam_forward(x, beta))
    ref = cam_reference(x, beta)
    assert out.shape == (b, c, h, w)
    assert jnp.allclose(out, ref, atol=1e-5, rtol=1e-5), "mismatch (beta=0)"

    # Nonzero beta exercises the attention path.
    beta_nz = jnp.asarray([0.5], dtype=jnp.float32)
    out_nz = jax.block_until_ready(cam_forward(x, beta_nz))
    ref_nz = cam_reference(x, beta_nz)
    assert jnp.allclose(out_nz, ref_nz, atol=1e-4, rtol=1e-4), "mismatch (beta!=0)"

    # Non-128-multiple spatial + non-8-multiple channels (exercises padding).
    x2 = jax.random.normal(jax.random.PRNGKey(1), (2, 6, 14, 14), dtype=jnp.float32)
    out2 = jax.block_until_ready(cam_forward(x2, beta_nz))
    ref2 = cam_reference(x2, beta_nz)
    assert jnp.allclose(out2, ref2, atol=1e-4, rtol=1e-4), "mismatch (padded shapes)"

    # Exercise the hw-tiled two-phase fallback path as well.
    out_t = jax.block_until_ready(
        cam_forward(x, beta_nz, hw_tile=128, force_tiled=True))
    assert jnp.allclose(out_t, ref_nz, atol=1e-4, rtol=1e-4), "mismatch (tiled path)"

    # bf16 input: native-dtype MXU feed with f32 accumulation.
    xb = x.astype(jnp.bfloat16)
    out_b = jax.block_until_ready(cam_forward(xb, beta_nz))
    ref_b = cam_reference(xb.astype(jnp.float32), beta_nz)
    assert jnp.allclose(out_b.astype(jnp.float32), ref_b, atol=5e-2, rtol=5e-2), \
        "mismatch (bf16)"

    print("KERNEL_OK")
</pallas_src>

<mosaic_0001>
module attributes {stable_mosaic.version = 11 : i64} {
  func.func @_cam_single_kernel(%arg0: i32, %arg1: memref<1xf32, #tpu.memory_space<smem>>, %arg2: memref<1x4x256xf32, #tpu.memory_space<vmem>>, %arg3: memref<1x4x256xf32, #tpu.memory_space<vmem>>) attributes {dimension_semantics = [#tpu.dimension_semantics<parallel>], iteration_bounds = array<i64: 2>, scalar_prefetch = 0 : i64, scratch_operands = 0 : i64, tpu.core_type = #tpu.core_type<tc>, window_params = [{transform_indices = @transform_0, window_bounds = array<i64: 1>}, {transform_indices = @transform_1, window_bounds = array<i64: 1, 4, 256>}, {transform_indices = @transform_2, window_bounds = array<i64: 1, 4, 256>}]} {
    %c0 = arith.constant 0 : index
    %c0_0 = arith.constant 0 : index
    %c0_1 = arith.constant 0 : index
    %0 = vector.load %arg2[%c0, %c0_0, %c0_1] : memref<1x4x256xf32, #tpu.memory_space<vmem>>, vector<1x4x256xf32>
    %cst = arith.constant dense<0.000000e+00> : vector<1x4x4xf32>
    %1 = tpu.matmul %0, %0, %cst {dimension_numbers = #tpu.dot_dimension_numbers<[2], [2], [1], [1], [0, 0, 0, 1, 1, 1], [0], [0]>} : vector<1x4x256xf32>, vector<1x4x256xf32>, vector<1x4x4xf32> -> vector<1x4x4xf32>
    %cst_2 = arith.constant dense<0xFF800000> : vector<1x4xf32>
    %2 = vector.multi_reduction <maximumf>, %1, %cst_2 [2] : vector<1x4x4xf32> to vector<1x4xf32>
    %3 = vector.shape_cast %2 : vector<1x4xf32> to vector<1x4x1xf32>
    %4 = vector.broadcast %3 : vector<1x4x1xf32> to vector<1x4x4xf32>
    %5 = arith.subf %1, %4 : vector<1x4x4xf32>
    %6 = math.exp %5 : vector<1x4x4xf32>
    %c0_3 = arith.constant 0 : index
    %7 = memref.load %arg1[%c0_3] : memref<1xf32, #tpu.memory_space<smem>>
    %8 = vector.broadcast %7 : f32 to vector<1x4x4xf32>
    %9 = arith.mulf %8, %6 : vector<1x4x4xf32>
    %cst_4 = arith.constant dense<0.000000e+00> : vector<1x4xf32>
    %10 = vector.multi_reduction <add>, %6, %cst_4 [2] : vector<1x4x4xf32> to vector<1x4xf32>
    %11 = vector.shape_cast %10 : vector<1x4xf32> to vector<1x4x1xf32>
    %12 = tpu.reciprocal %11 : vector<1x4x1xf32> -> vector<1x4x1xf32>
    %13 = vector.broadcast %12 : vector<1x4x1xf32> to vector<1x4x4xf32>
    %14 = arith.mulf %9, %13 : vector<1x4x4xf32>
    %cst_5 = arith.constant dense<0.000000e+00> : vector<1x4x256xf32>
    %15 = tpu.matmul %14, %0, %cst_5 {dimension_numbers = #tpu.dot_dimension_numbers<[2], [1], [1], [2], [0, 0, 0, 1, 1, 2], [0], [0]>} : vector<1x4x4xf32>, vector<1x4x256xf32>, vector<1x4x256xf32> -> vector<1x4x256xf32>
    %16 = arith.addf %15, %0 : vector<1x4x256xf32>
    %c0_6 = arith.constant 0 : index
    %c0_7 = arith.constant 0 : index
    %c0_8 = arith.constant 0 : index
    %17 = vector.load %arg3[%c0_6, %c0_7, %c0_8] : memref<1x4x256xf32, #tpu.memory_space<vmem>>, vector<1x4x256xf32>
    tpu.vector_store %arg3[%c0_6, %c0_7, %c0_8], %16 {strides = array<i32>} : memref<1x4x256xf32, #tpu.memory_space<vmem>>, vector<1x4x256xf32>,
    return
  }
  func.func @transform_0(%arg0: i32) -> i32 {
    %c0_i32 = arith.constant 0 : i32
    %c0_i32_0 = arith.constant 0 : i32
    return %c0_i32 : i32
  }
  func.func @transform_1(%arg0: i32) -> (i32, i32, i32) {
    %c0_i32 = arith.constant 0 : i32
    %c0_i32_0 = arith.constant 0 : i32
    %c0_i32_1 = arith.constant 0 : i32
    return %arg0, %c0_i32, %c0_i32_0 : i32, i32, i32
  }
  func.func @transform_2(%arg0: i32) -> (i32, i32, i32) {
    %c0_i32 = arith.constant 0 : i32
    %c0_i32_0 = arith.constant 0 : i32
    %c0_i32_1 = arith.constant 0 : i32
    return %arg0, %c0_i32, %c0_i32_0 : i32, i32, i32
  }
}

</mosaic_0001>

<llo_original>
// kernel: tpu_custom_call.1
$region0: #{tpu_custom_call.1}
  #allocation0 [shape = 'u32[]', space=smem, size = 0x4, offset = 0x4, fixed_abs, tag = 'smem constant byte address 0x4 - core index']
  #allocation1 [shape = 'u32[72,128]{1,0:T(1,128)}', space=vmem, size = 0x9000, scoped, tag = 'internal scratch']
  #allocation2 [shape = 'f32[1]{0:T(128)S(6)}', space=smem, size = 0x200, scoped, tag = 'scoped memory for tpu_custom_call.1']
  %s0 = inlined_call_operand.<no memory space> [shape: f32[1], index: 0, kind: input, shape index: {}]
  %s1 = inlined_call_operand.hbm [shape: f32[2,4,256], index: 1, kind: input, shape index: {}]
  %s2 = inlined_call_operand.hbm [shape: f32[2,4,256], index: 2, kind: output, shape index: {}]
  %s3 = sld [smem:[#allocation0]]
  $region45: #{tpu_custom_call.1} parent=0
    _
  %s5 = ssub.s32 1, %s3
  %s6 = scalar_select 0, %s5, %s3
  %7 = sst [smem:[#allocation2]] %s0
  $region1: #{tpu_custom_call.1} parent=0
    #allocation3 [shape = 'u8[8192]{0}', space=vmem, size = 0x2000, scoped, tag = 'input window, operand 1']
    #allocation4 [shape = 's32[2]{0}', space=sflag, size = 0x8, scoped, tag = 'scoped memory for tpu_custom_call.1']
    #allocation5 [shape = 's32[2]{0}', space=sflag, size = 0x8, scoped, tag = 'scoped memory for tpu_custom_call.1']
    #allocation6 [shape = 'u8[8192]{0}', space=vmem, size = 0x2000, scoped, tag = 'output window, operand 0']
    %8 = vsyncpa [#allocation4], 0
    %s9 = scalar_lea.sflag [#allocation4], 1
    %10 = vsyncpa %s9, 0
    %11 = vsyncpa [#allocation5], 0
    %s12 = scalar_lea.sflag [#allocation5], 1
    %13 = vsyncpa %s12, 0
    loop: start=0, step=1, limit=4
    $region2: #{tpu_custom_call.1} parent=1 // loop_pre_header
      _
    $region3: #{tpu_custom_call.1} parent=1 // loop_header
      %s15 = sphi 0, %s19
      %p16 = scmp.ge.s32.totalorder %s15, 4
      %s23 = sphi 0, %s23
      %s25 = sphi 0, %s23
      %s26 = sphi 0, %s25
      %s40 = sphi 0, %s26
      %s46 = sphi 0, %s48
      %s49 = sphi 0, %s46
      %s50 = sphi 0, %s49
      %s66 = sphi 0, %s50
      %s72 = sphi 0, %s74
      %s75 = sphi 0, %s72
      %s76 = sphi 0, %s75
      %s92 = sphi 0, %s76
    $region4: #{tpu_custom_call.1} parent=1 // loop_header_branch
      %18 = sbr.rel (%p16) target = $region8
    $region5: #{tpu_custom_call.1} parent=1 // loop_body
      %s20 = ssub.s32 %s15, 1
      %s21 = ssub.s32 %s15, 2
      %s22 = sadd.s32 %s15, 1
      %s24 = sadd.s32 %s23, 1
      %p27 = scmp.eq.s32.totalorder %s15, 1
      %p28 = scmp.ne.s32.totalorder %s23, %s25
      %p29 = scmp.eq.s32.totalorder %s15, 0
      %p30 = por %p28, %p29
      %p31 = scmp.ne.s32.totalorder %s23, %s25
      %p32 = scmp.eq.s32.totalorder %s20, 1
      %p33 = por %p31, %p32
      %p34 = scmp.ne.s32.totalorder %s25, %s26
      %p35 = scmp.eq.s32.totalorder %s20, 0
      %p36 = por %p34, %p35
      %p37 = scmp.ne.s32.totalorder %s25, %s26
      %p38 = scmp.eq.s32.totalorder %s21, 1
      %p39 = por %p37, %p38
      %p41 = scmp.ne.s32.totalorder %s26, %s40
      %p42 = scmp.eq.s32.totalorder %s21, 0
      %p43 = por %p41, %p42
      %s44 = ssub.s32 %s15, %s22
      %p45 = scmp.eq.s32.totalorder %s44, 0
      %s47 = sadd.s32 %s46, 1
      %s48 = scalar_select %p45, %s46, %s47
      %p51 = pneg %p45
      %p52 = scmp.eq.s32.totalorder %s15, 1
      %p53 = por %p51, %p52
      %p54 = scmp.ne.s32.totalorder %s46, %s49
      %p55 = scmp.eq.s32.totalorder %s15, 0
      %p56 = por %p54, %p55
      %p57 = scmp.ne.s32.totalorder %s46, %s49
      %p58 = scmp.eq.s32.totalorder %s20, 1
      %p59 = por %p57, %p58
      %p60 = scmp.ne.s32.totalorder %s49, %s50
      %p61 = scmp.eq.s32.totalorder %s20, 0
      %p62 = por %p60, %p61
      %p63 = scmp.ne.s32.totalorder %s49, %s50
      %p64 = scmp.eq.s32.totalorder %s21, 1
      %p65 = por %p63, %p64
      %p67 = scmp.ne.s32.totalorder %s50, %s66
      %p68 = scmp.eq.s32.totalorder %s21, 0
      %p69 = por %p67, %p68
      %s70 = ssub.s32 %s15, %s22
      %p71 = scmp.eq.s32.totalorder %s70, 0
      %s73 = sadd.s32 %s72, 1
      %s74 = scalar_select %p71, %s72, %s73
      %p77 = pneg %p71
      %p78 = scmp.eq.s32.totalorder %s15, 1
      %p79 = por %p77, %p78
      %p80 = scmp.ne.s32.totalorder %s72, %s75
      %p81 = scmp.eq.s32.totalorder %s15, 0
      %p82 = por %p80, %p81
      %p83 = scmp.ne.s32.totalorder %s72, %s75
      %p84 = scmp.eq.s32.totalorder %s20, 1
      %p85 = por %p83, %p84
      %p86 = scmp.ne.s32.totalorder %s75, %s76
      %p87 = scmp.eq.s32.totalorder %s20, 0
      %p88 = por %p86, %p87
      %p89 = scmp.ne.s32.totalorder %s75, %s76
      %p90 = scmp.eq.s32.totalorder %s21, 1
      %p91 = por %p89, %p90
      %p93 = scmp.ne.s32.totalorder %s76, %s92
      %p94 = scmp.eq.s32.totalorder %s21, 0
      %p95 = por %p93, %p94
      %p96 = scmp.le.s32.totalorder 1, %s15
      %p97 = scmp.lt.s32.totalorder %s15, 3
      %p98 = pnand %p96, %p97
      %p99 = pneg %p98
      // Predicated region
      $region9: #{tpu_custom_call.1} parent=5 // pred_check
        _
      $region10: #{tpu_custom_call.1} parent=5 // pred_check_branch
        %101 = sbr.rel (%p98) target = $region12
      $region11: #{tpu_custom_call.1} parent=5 // pred_region
        %s102 = ssub.s32 %s15, 1
        // Predicated region
        $region13: #{tpu_custom_call.1} parent=11 // pred_check
          %p103 = pneg %p36
        $region14: #{tpu_custom_call.1} parent=11 // pred_check_branch
          %105 = sbr.rel (%p103) target = $region16
        $region15: #{tpu_custom_call.1} parent=11 // pred_region
          _
        $region16: #{tpu_custom_call.1} parent=11 // pred_fallthru
          _
      $region12: #{tpu_custom_call.1} parent=5 // pred_fallthru
        _
      %p106 = scmp.lt.s32.totalorder %s15, 2
      // Predicated region
      $region17: #{tpu_custom_call.1} parent=5 // pred_check
        %p107 = pneg %p106
      $region18: #{tpu_custom_call.1} parent=5 // pred_check_branch
        %109 = sbr.rel (%p107) target = $region20
      $region19: #{tpu_custom_call.1} parent=5 // pred_region
        // Predicated region
        $region21: #{tpu_custom_call.1} parent=19 // pred_check
          %p110 = pneg %p56
        $region22: #{tpu_custom_call.1} parent=19 // pred_check_branch
          %112 = sbr.rel (%p110) target = $region24
        $region23: #{tpu_custom_call.1} parent=19 // pred_region
          %s113 = sand.u32 %s46, 1
          %s114 = scalar_lea.sflag [#allocation4], %s113
          %s115 = sand.u32 %s46, 1
          %s116 = smul.addr %s115, 8
          %s117 = scalar_lea.vmem [#allocation3], %s116
          %119 = vsyncadd %s114, 0
          %s120 = smul.addr %s15, 2
          %s121 = smul.addr %s120, 4
          %s122 = scalar_lea.hbm %s1, %s121
          %s124 = sshll.u32 %s122, 4
          %s125 = int_to_ptr.hbm [resolvable:$true] %s124
          %s126 = sshll.u32 %s117, 4
          %s127 = int_to_ptr.vmem [resolvable:$true] %s126
          %129 = dma.hbm_to_vmem [thread:$0]  %s125, 128, %s127, %s114
        $region24: #{tpu_custom_call.1} parent=19 // pred_fallthru
          _
      $region20: #{tpu_custom_call.1} parent=5 // pred_fallthru
        _
      %p130 = scmp.le.s32.totalorder 1, %s15
      %p131 = scmp.lt.s32.totalorder %s15, 3
      %p132 = pnand %p130, %p131
      %p133 = pneg %p132
      // Predicated region
      $region25: #{tpu_custom_call.1} parent=5 // pred_check
        _
      $region26: #{tpu_custom_call.1} parent=5 // pred_check_branch
        %135 = sbr.rel (%p132) target = $region28
      $region27: #{tpu_custom_call.1} parent=5 // pred_region
        %s136 = ssub.s32 %s15, 1
        %s137 = sand.u32 %s49, 1
        %s138 = scalar_lea.sflag [#allocation4], %s137
        %s139 = sand.u32 %s49, 1
        %s140 = smul.addr %s139, 8
        %s141 = scalar_lea.vmem [#allocation3], %s140
        // Predicated region
        $region29: #{tpu_custom_call.1} parent=27 // pred_check
          %p142 = pneg %p62
        $region30: #{tpu_custom_call.1} parent=27 // pred_check_branch
          %144 = sbr.rel (%p142) target = $region32
        $region31: #{tpu_custom_call.1} parent=27 // pred_region
          %146 = dma.done %s138, 128
        $region32: #{tpu_custom_call.1} parent=27 // pred_fallthru
          _
        %p147 = pneg %p36
        %p148 = pneg %p33
        %s149 = sand.u32 %s49, 1
        %s150 = scalar_lea.sflag [#allocation4], %s149
        %s151 = sand.u32 %s49, 1
        %s152 = smul.addr %s151, 8
        %s153 = scalar_lea.vmem [#allocation3], %s152
        %p154 = pneg %p62
        %p155 = pneg %p59
        %p156 = pneg %p88
        %p157 = pneg %p85
        %s158 = sand.u32 %s75, 1
        %s159 = scalar_lea.sflag [#allocation5], %s158
        %s160 = sand.u32 %s75, 1
        %s161 = smul.addr %s160, 8
        %s162 = scalar_lea.vmem [#allocation6], %s161
        %v163 = vld [vmem:[%s141] sm:$0xff]
        %165 = vst [vmem:[#allocation1] ss:$2 sm:$0xff] %v163
        %v166 = vld.sshfl [vmem:[#allocation1] sm:$0xff pattern:$0x75316420]
        %v167 = vld.sshfl [vmem:[#allocation1 + $0x8] sm:$0xff pattern:$0x75316420]
        %170 = vst [vmem:[#allocation1] ss:$2 sm:$0xff] %v163
        %v171 = vld.sshfl [vmem:[#allocation1] sm:$0xff pattern:$0x75316420]
        %v172 = vld.sshfl [vmem:[#allocation1 + $0x8] sm:$0xff pattern:$0x75316420]
        %175 = vmatpush.xpose.msra.mxu0 0.0
        %176 = vmatpush.xpose.msra.mxu0 0.0
        %177 = vmatpush.xpose.msra.mxu0 0.0
        %178 = vmatpush.xpose.msra.mxu0 0.0
        %179 = vmatpush.xpose.msra.mxu0 0.0
        %180 = vmatpush.xpose.msra.mxu0 0.0
        %181 = vmatpush.xpose.msra.mxu0 0.0
        %182 = vmatpush.xpose.msra.mxu0 0.0
        %183 = vmatpush.xpose.msra.mxu0 0.0
        %184 = vmatpush.xpose.msra.mxu0 0.0
        %185 = vmatpush.xpose.msra.mxu0 0.0
        %186 = vmatpush.xpose.msra.mxu0 0.0
        %187 = vmatpush.xpose.msra.mxu0 0.0
        %188 = vmatpush.xpose.msra.mxu0 0.0
        %189 = vmatpush.xpose.msra.mxu0 0.0
        %190 = vmatpush.xpose.msra.mxu0 %v171
        %191 = vmatmul.f32.gmra.mxu0 %v166
        %v192 = vpop.f32.mrf.mxu0
        %v193 = vadd.f32 0.0, %v192
        %194 = vdwg.mxu0
        %195 = vmatpush.xpose.msra.mxu0 0.0
        %196 = vmatpush.xpose.msra.mxu0 0.0
        %197 = vmatpush.xpose.msra.mxu0 0.0
        %198 = vmatpush.xpose.msra.mxu0 0.0
        %199 = vmatpush.xpose.msra.mxu0 0.0
        %200 = vmatpush.xpose.msra.mxu0 0.0
        %201 = vmatpush.xpose.msra.mxu0 0.0
        %202 = vmatpush.xpose.msra.mxu0 0.0
        %203 = vmatpush.xpose.msra.mxu0 0.0
        %204 = vmatpush.xpose.msra.mxu0 0.0
        %205 = vmatpush.xpose.msra.mxu0 0.0
        %206 = vmatpush.xpose.msra.mxu0 0.0
        %207 = vmatpush.xpose.msra.mxu0 0.0
        %208 = vmatpush.xpose.msra.mxu0 0.0
        %209 = vmatpush.xpose.msra.mxu0 0.0
        %210 = vmatpush.xpose.msra.mxu0 %v172
        %211 = vmatmul.f32.gmra.mxu0 %v167
        %v212 = vpop.f32.mrf.mxu0
        %v213 = vadd.f32 %v193, %v212
        %214 = vdwg.mxu0
        %vm215 = vcmask 27648
        %v216 = vsel %vm215, %v213, -inf
        %217 = vmax.xlane.f32.xlu0 %v216
        %v218 = vpop.xlane.xlu0 %217
        %v219 = vsub.f32 %v213, %v218
        %v220 = vmul.f32 %v219, 1.442695
        %v221 = vpow.pop %v220
        %s222 = sld [smem:[#allocation2]]
        %v223 = vstv %s222
        %v224 = vmul.f32 %v223, %v221
        %v225 = vsel %vm215, %v221, 0.0
        %226 = vadd.xlane.f32.xlu0 %v225
        %v227 = vpop.xlane.xlu0 %226
        %v228 = vrcp.pop %v227
        %v229 = vmul.f32 %v227, %v228
        %v230 = vsub.f32 1.0, %v229
        %v231 = vmul.f32 %v228, %v230
        %v232 = vadd.f32 %v228, %v231
        %vm233 = vweird.f32 %v227
        %vm234 = vweird.f32 %v228
        %vm235 = vmor %vm233, %vm234
        %v236 = vsel %vm235, %v228, %v232
        %v237 = vand.u32 2147483647, %v227
        %vm238 = vcmp.eq.f32.partialorder %v237, 8.507059e+37
        %v239 = vand.u32 %v227, 2147483648
        %v240 = vor.u32 1.1754944e-38, %v239
        %v241 = vsel %vm238, %v240, %v236
        %v242 = vmul.f32 %v224, %v241
        %243 = vst [vmem:[#allocation1] ss:$2 sm:$0xff] %v163
        %v244 = vld.sshfl [vmem:[#allocation1] sm:$0xff pattern:$0x75316420]
        %v245 = vld.sshfl [vmem:[#allocation1 + $0x8] sm:$0xff pattern:$0x75316420]
        %246 = vst [vmem:[#allocation1] ss:$2 sm:$0xff] %v163
        %v247 = vld.sshfl [vmem:[#allocation1] sm:$0xff pattern:$0x75316420]
        %v248 = vld.sshfl [vmem:[#allocation1 + $0x8] sm:$0xff pattern:$0x75316420]
        %vm251 = vcmask 31744
        %v253 = vsel %vm251, %v242, 0
        %vm255 = vcmask 1043456
        %v256 = vsel %vm255, %v244, 0
        %v258 = vsel %vm255, %v245, 0
        %260 = vmatpush.msra.mxu0 0.0
        %261 = vmatpush.msra.mxu0 0.0
        %262 = vmatpush.msra.mxu0 0.0
        %263 = vmatpush.msra.mxu0 0.0
        %264 = vmatpush.msra.mxu0 0.0
        %265 = vmatpush.msra.mxu0 0.0
        %266 = vmatpush.msra.mxu0 0.0
        %267 = vmatpush.msra.mxu0 0.0
        %268 = vmatpush.msra.mxu0 0.0
        %269 = vmatpush.msra.mxu0 0.0
        %270 = vmatpush.msra.mxu0 0.0
        %271 = vmatpush.msra.mxu0 0.0
        %272 = vmatpush.msra.mxu0 0.0
        %273 = vmatpush.msra.mxu0 0.0
        %274 = vmatpush.msra.mxu0 0.0
        %275 = vmatpush.msra.mxu0 %v256
        %276 = vmatmul.f32.gmra.mxu0 %v253
        %v277 = vpop.f32.mrf.mxu0
        %v278 = vadd.f32 %v247, %v277
        %279 = vdwg.mxu0
        %280 = vmatpush.msra.mxu0 0.0
        %281 = vmatpush.msra.mxu0 0.0
        %282 = vmatpush.msra.mxu0 0.0
        %283 = vmatpush.msra.mxu0 0.0
        %284 = vmatpush.msra.mxu0 0.0
        %285 = vmatpush.msra.mxu0 0.0
        %286 = vmatpush.msra.mxu0 0.0
        %287 = vmatpush.msra.mxu0 0.0
        %288 = vmatpush.msra.mxu0 0.0
        %289 = vmatpush.msra.mxu0 0.0
        %290 = vmatpush.msra.mxu0 0.0
        %291 = vmatpush.msra.mxu0 0.0
        %292 = vmatpush.msra.mxu0 0.0
        %293 = vmatpush.msra.mxu0 0.0
        %294 = vmatpush.msra.mxu0 0.0
        %295 = vmatpush.msra.mxu0 %v258
        %296 = vmatmul.f32.gmra.mxu0 %v253
        %v297 = vpop.f32.mrf.mxu0
        %v298 = vadd.f32 %v248, %v297
        %299 = vdwg.mxu0
        %v302 = vrot.slane %v298, 4
        %v303 = vsel %vm255, %v278, %v302
        %305 = vst [vmem:[%s162] sm:$0xff] %v303
        %s306 = sand.u32 %s75, 1
        %s307 = scalar_lea.sflag [#allocation5], %s306
        %s308 = sand.u32 %s75, 1
        %s309 = smul.addr %s308, 8
        %s310 = scalar_lea.vmem [#allocation6], %s309
        // Predicated region
        $region33: #{tpu_custom_call.1} parent=27 // pred_check
          %p311 = pneg %p85
        $region34: #{tpu_custom_call.1} parent=27 // pred_check_branch
          %313 = sbr.rel (%p311) target = $region36
        $region35: #{tpu_custom_call.1} parent=27 // pred_region
          %315 = vsyncadd %s307, 0
          %s316 = smul.addr %s20, 2
          %s317 = smul.addr %s316, 4
          %s318 = scalar_lea.hbm %s2, %s317
          %s320 = sshll.u32 %s310, 4
          %s321 = int_to_ptr.vmem [resolvable:$true] %s320
          %s322 = sshll.u32 %s318, 4
          %s323 = int_to_ptr.hbm [resolvable:$true] %s322
          %325 = dma.vmem_to_hbm [thread:$0]  %s321, 128, %s323, %s307
        $region36: #{tpu_custom_call.1} parent=27 // pred_fallthru
          _
      $region28: #{tpu_custom_call.1} parent=5 // pred_fallthru
        _
      %p326 = scmp.le.s32.totalorder 2, %s15
      // Predicated region
      $region37: #{tpu_custom_call.1} parent=5 // pred_check
        %p327 = pneg %p326
      $region38: #{tpu_custom_call.1} parent=5 // pred_check_branch
        %329 = sbr.rel (%p327) target = $region40
      $region39: #{tpu_custom_call.1} parent=5 // pred_region
        %s330 = ssub.s32 %s15, 2
        // Predicated region
        $region41: #{tpu_custom_call.1} parent=39 // pred_check
          %p331 = pneg %p91
        $region42: #{tpu_custom_call.1} parent=39 // pred_check_branch
          %333 = sbr.rel (%p331) target = $region44
        $region43: #{tpu_custom_call.1} parent=39 // pred_region
          %s334 = sand.u32 %s76, 1
          %s335 = scalar_lea.sflag [#allocation5], %s334
          %s336 = sand.u32 %s76, 1
          %s337 = smul.addr %s336, 8
          %s338 = scalar_lea.vmem [#allocation6], %s337
          %340 = dma.done %s335, 128
        $region44: #{tpu_custom_call.1} parent=39 // pred_fallthru
          _
      $region40: #{tpu_custom_call.1} parent=5 // pred_fallthru
        _
    $region6: #{tpu_custom_call.1} parent=1 // loop_footer
      %s19 = sadd.s32 1, %s15
    $region7: #{tpu_custom_call.1} parent=1 // loop_footer_branch
      %14 = sbr.rel target = $region3
    $region8: #{tpu_custom_call.1} parent=1 // loop_exit
      _
    %341 = vsyncpa [#allocation4], 1
    %s342 = scalar_lea.sflag [#allocation4], 1
    %343 = vsyncpa %s342, 1
    %344 = vsyncpa [#allocation5], 1
    %s345 = scalar_lea.sflag [#allocation5], 1
    %346 = vsyncpa %s345, 1

</llo_original>
